<compile_context>
chip_gen: v6e
topology: v6e:2x2x1
jax: 0.10.0
libtpu: 0.0.40
codegen_flags: <defaults>
</compile_context>

<pallas_src>
import numpy as np
import jax
import jax.numpy as jnp
from jax.experimental import pallas as pl
from jax.experimental.pallas import tpu as pltpu


def make_rel_pos_index(window_size: int) -> np.ndarray:
    """Static relative-position index table, identical to the PyTorch __init__."""
    grid = np.arange(window_size)
    pos = np.stack(np.meshgrid(grid, grid, indexing="ij"))
    pos = pos.reshape((2, -1))
    pos = pos[:, :, None] - pos[:, None, :]
    pos += window_size - 1
    pos[0] *= 2 * window_size - 1
    return pos.sum(0).astype("int64")  # (N, N)


def _add_bias_kernel(x_ref, bias_ref, o_ref):
    # x_ref   : (TB, TL) block of x rows (lane-dense last dim)
    # bias_ref: (1,  TL) bias chunk, broadcast over the TB rows
    # Compute in f32 then cast (PyTorch in-place add_ promote-then-cast
    # semantics for bf16 x); free on an HBM-bound kernel.
    x = x_ref[...].astype(jnp.float32)
    b = bias_ref[...].astype(jnp.float32)
    o_ref[...] = (x + b).astype(o_ref.dtype)


def _choose_tiles(B, L, x_itemsize,
                  target_block_bytes=4 << 20,
                  max_block_bytes=8 << 20,
                  min_grid_steps=8):
    """Pick (TB, TL) tiles for the lane-dense (B, L) view of x.

    Legality ((8,128) rule): TB is a multiple of 8 or == B; TL is a multiple
    of 128 that divides L, or == L.
    Goals: >= min_grid_steps grid steps (pipelining + both v7x TensorCores),
    x blocks near `target_block_bytes` (<= max) to amortize per-step overhead.
    """
    # Candidate lane tiles.
    if L % 128 == 0 and L > 128:
        tl_cands = [tl for tl in range(128, L + 1, 128) if L % tl == 0]
    else:
        tl_cands = [L]
    # Candidate batch tiles: 8 * powers of two, plus B itself.
    if B < 8:
        tb_cands = [B]
    else:
        tb_cands = []
        tb = 8
        while tb < B:
            tb_cands.append(tb)
            tb *= 2
        tb_cands.append(B)

    def block_bytes(tb, tl):
        return tb * tl * x_itemsize

    def steps(tb, tl):
        return pl.cdiv(B, tb) * pl.cdiv(L, tl)

    cands = [(tb, tl) for tb in tb_cands for tl in tl_cands]
    feasible = [c for c in cands if block_bytes(*c) <= max_block_bytes]
    if not feasible:
        # A minimum-height block already exceeds the budget (huge H*N^2 with a
        # non-128-multiple L): take the smallest block and let the VMEM limit
        # grow.  # TODO(synk): head-axis (B, H, N*N) tiling for this corner.
        return min(cands, key=lambda c: block_bytes(*c))
    enough = [c for c in feasible if steps(*c) >= min_grid_steps]
    if enough:
        # Largest block that still leaves enough grid steps to pipeline.
        return max(enough, key=lambda c: (block_bytes(*c), -steps(*c)))
    # Tiny problem: can't reach min_grid_steps -> maximize steps, then block.
    return max(feasible, key=lambda c: (steps(*c), block_bytes(*c)))


def _vmem_limit_bytes(tb, tl, x_itemsize, bias_itemsize):
    # x: in + out, each double-buffered; bias: double-buffered (its index is
    # constant across the inner sweep, but budget both buffers); + slack for
    # Mosaic internals.
    need = 4 * tb * tl * x_itemsize + 2 * tl * bias_itemsize + (2 << 20)
    # Keep >= 32 MiB headroom, but stay under v7x's 64 MiB physical VMEM
    # (v5e/v6e have 128 MiB, so this cap is safe on every generation).
    return int(min(max(need, 32 << 20), 56 << 20))


def rel_pos_embed(x: jax.Array, bias: jax.Array) -> jax.Array:
    """Swin relative-position bias add: returns x + bias[None] (broadcast over B).

    x    : (B, H, N, N) attention logits (any float dtype).
    bias : (H, N, N)    gathered weight[:, index] (kept in f32).

    NOTE: the output is aliased onto x (PyTorch's in-place x.add_).  Run this
    under jax.jit(rel_pos_embed, donate_argnums=(0,)) so the alias takes
    effect; in eager / non-donating mode the result is still correct but XLA
    inserts a defensive copy of x.
    """
    B, H, N, N2 = x.shape
    assert N == N2 and bias.shape == (H, N, N)
    L = H * N * N

    # Free layout plumbing: lane-dense 2-D views (reshape is a bitcast in XLA).
    x2 = x.reshape(B, L)
    bias2 = bias.reshape(1, L)  # stays f32; promote-then-cast happens in-kernel

    TB, TL = _choose_tiles(B, L, x2.dtype.itemsize)
    num_b = pl.cdiv(B, TB)
    num_l = pl.cdiv(L, TL)

    # L-tiles outermost so the bias chunk's block index is constant across the
    # inner batch sweep (fetched once per L-tile, not every step).
    grid = (num_l, num_b)

    out2 = pl.pallas_call(
        _add_bias_kernel,
        out_shape=jax.ShapeDtypeStruct((B, L), x.dtype),
        grid_spec=pl.GridSpec(
            grid=grid,
            in_specs=[
                pl.BlockSpec((TB, TL), lambda j, i: (i, j)),  # x rows, streamed
                pl.BlockSpec((1, TL), lambda j, i: (0, j)),   # bias chunk
            ],
            out_specs=pl.BlockSpec((TB, TL), lambda j, i: (i, j)),
        ),
        input_output_aliases={0: 0},  # in-place semantics of PyTorch x.add_()
        compiler_params=pltpu.CompilerParams(
            dimension_semantics=("parallel", "parallel"),
            vmem_limit_bytes=_vmem_limit_bytes(
                TB, TL, x2.dtype.itemsize, bias2.dtype.itemsize),
        ),
    )(x2, bias2)
    return out2.reshape(B, H, N, N)


if __name__ == "__main__":
    # Small, module-consistent shapes.
    num_heads = 4
    window_size = 4
    N = window_size * window_size                     # 16
    num_pos = (2 * window_size - 1) ** 2 + 3          # 52
    batch = 2                                         # e.g. B * num_windows

    key = jax.random.PRNGKey(0)
    k_w, k_x = jax.random.split(key)

    # Deterministic parameter init (matches nn.init.normal_(std=0.02)).
    weight = 0.02 * jax.random.normal(k_w, (num_heads, num_pos), dtype=jnp.float32)

    # Example attention-logit input.
    x = jax.random.normal(k_x, (batch, num_heads, N, N), dtype=jnp.float32)

    # Static index table + parameter gather: done ONCE per module (cache as state).
    index = jnp.asarray(make_rel_pos_index(window_size), dtype=jnp.int32)  # (N, N)
    bias = weight[:, index]  # (num_heads, N, N), f32

    # Reference (same semantics as x.add_(weight[:, index])), materialized
    # BEFORE the donating call consumes x's buffer.
    ref = np.asarray(x + bias[None])
    x_dtype = x.dtype

    # jit + donate x so input_output_aliases actually reuses x's HBM buffer
    # (no defensive copy) — the documented call-site contract.
    fwd = jax.jit(rel_pos_embed, donate_argnums=(0,))
    out = jax.block_until_ready(fwd(x, bias))

    assert out.shape == (batch, num_heads, N, N) and out.dtype == x_dtype
    np.testing.assert_allclose(np.asarray(out), ref, rtol=1e-6, atol=1e-6)

    print("KERNEL_OK")
</pallas_src>

<mosaic_0001>
module attributes {stable_mosaic.version = 11 : i64} {
  func.func @_add_bias_kernel(%arg0: i32, %arg1: i32, %arg2: memref<2x128xf32, #tpu.memory_space<vmem>>, %arg3: memref<1x128xf32, #tpu.memory_space<vmem>>, %arg4: memref<2x128xf32, #tpu.memory_space<vmem>>) attributes {dimension_semantics = [#tpu.dimension_semantics<parallel>, #tpu.dimension_semantics<parallel>], iteration_bounds = array<i64: 8, 1>, scalar_prefetch = 0 : i64, scratch_operands = 0 : i64, tpu.core_type = #tpu.core_type<tc>, window_params = [{transform_indices = @transform_0, window_bounds = array<i64: 2, 128>}, {transform_indices = @transform_1, window_bounds = array<i64: 1, 128>}, {transform_indices = @transform_2, window_bounds = array<i64: 2, 128>}]} {
    %c0 = arith.constant 0 : index
    %c0_0 = arith.constant 0 : index
    %0 = vector.load %arg2[%c0, %c0_0] : memref<2x128xf32, #tpu.memory_space<vmem>>, vector<2x128xf32>
    %c0_1 = arith.constant 0 : index
    %c0_2 = arith.constant 0 : index
    %1 = vector.load %arg3[%c0_1, %c0_2] : memref<1x128xf32, #tpu.memory_space<vmem>>, vector<1x128xf32>
    %2 = vector.broadcast %1 : vector<1x128xf32> to vector<2x128xf32>
    %3 = arith.addf %0, %2 : vector<2x128xf32>
    %c0_3 = arith.constant 0 : index
    %c0_4 = arith.constant 0 : index
    %4 = vector.load %arg4[%c0_3, %c0_4] : memref<2x128xf32, #tpu.memory_space<vmem>>, vector<2x128xf32>
    tpu.vector_store %arg4[%c0_3, %c0_4], %3 {strides = array<i32>} : memref<2x128xf32, #tpu.memory_space<vmem>>, vector<2x128xf32>,
    return
  }
  func.func @transform_0(%arg0: i32, %arg1: i32) -> (i32, i32) {
    %c0_i32 = arith.constant 0 : i32
    return %arg1, %arg0 : i32, i32
  }
  func.func @transform_1(%arg0: i32, %arg1: i32) -> (i32, i32) {
    %c0_i32 = arith.constant 0 : i32
    %c0_i32_0 = arith.constant 0 : i32
    return %c0_i32, %arg0 : i32, i32
  }
  func.func @transform_2(%arg0: i32, %arg1: i32) -> (i32, i32) {
    %c0_i32 = arith.constant 0 : i32
    return %arg1, %arg0 : i32, i32
  }
}

</mosaic_0001>

<llo_original>
// kernel: rel_pos_embed.1
$region0: #{rel_pos_embed.1}
  #allocation0 [shape = 'u32[]', space=smem, size = 0x4, offset = 0x4, fixed_abs, tag = 'smem constant byte address 0x4 - core index']
  #allocation1 [shape = 'u32[144,128]{1,0:T(1,128)}', space=vmem, size = 0x12000, scoped, tag = 'internal scratch']
  %s0 = inlined_call_operand.vmem [shape: f32[2,1024], index: 0, kind: input, shape index: {}, may-alias: {0,2}]
  %s1 = inlined_call_operand.vmem [shape: f32[1,1024], index: 1, kind: input, shape index: {}]
  %s2 = inlined_call_operand.vmem [shape: f32[2,1024], index: 2, kind: output, shape index: {}, may-alias: {0,2}]
  %s3 = sld [smem:[#allocation0]]
  $region41: #{rel_pos_embed.1} parent=0
    _
  %s5 = ssub.s32 1, %s3
  %s6 = scalar_select 0, %s5, %s3
  loop: start=0, step=1, limit=10
  $region2: #{rel_pos_embed.1} parent=0 // loop_pre_header
    _
  $region3: #{rel_pos_embed.1} parent=0 // loop_header
    %s8 = sphi 0, %s12
    %p9 = scmp.ge.s32.totalorder %s8, 10
    %s15 = sphi 0, %s27
    %s16 = sphi 0, %s23
    %s17 = sphi 0, %s15
    %s18 = sphi 0, %s16
    %s19 = sphi 0, %s17
    %s20 = sphi 0, %s18
    %s32 = sphi 0, %s34
    %s35 = sphi 0, %s32
    %s36 = sphi 0, %s35
    %s52 = sphi 0, %s36
    %s58 = sphi 0, %s60
    %s61 = sphi 0, %s58
    %s62 = sphi 0, %s61
    %s78 = sphi 0, %s62
    %s86 = sphi 0, %s88
    %s89 = sphi 0, %s86
    %s90 = sphi 0, %s89
    %s106 = sphi 0, %s90
  $region4: #{rel_pos_embed.1} parent=0 // loop_header_branch
    %11 = sbr.rel (%p9) target = $region8
  $region5: #{rel_pos_embed.1} parent=0 // loop_body
    %s13 = ssub.s32 %s8, 1
    %s14 = ssub.s32 %s8, 2
    %s21 = sadd.s32 1, %s16
    %p22 = scmp.ge.s32.totalorder %s21, 1
    %s23 = scalar_select %p22, 0, %s21
    %s24 = sadd.s32 1, %s15
    %s25 = scalar_select %p22, %s24, %s15
    %p26 = scmp.ge.s32.totalorder %s25, 8
    %s27 = scalar_select %p26, 0, %s25
    %s28 = ssub.s32 %s16, %s23
    %s29 = ssub.s32 %s15, %s27
    %s30 = sor.u32 %s28, %s29
    %p31 = scmp.eq.s32.totalorder %s30, 0
    %s33 = sadd.s32 %s32, 1
    %s34 = scalar_select %p31, %s32, %s33
    %p37 = pneg %p31
    %p38 = scmp.eq.s32.totalorder %s8, 7
    %p39 = por %p37, %p38
    %p40 = scmp.ne.s32.totalorder %s32, %s35
    %p41 = scmp.eq.s32.totalorder %s8, 0
    %p42 = por %p40, %p41
    %p43 = scmp.ne.s32.totalorder %s32, %s35
    %p44 = scmp.eq.s32.totalorder %s13, 7
    %p45 = por %p43, %p44
    %p46 = scmp.ne.s32.totalorder %s35, %s36
    %p47 = scmp.eq.s32.totalorder %s13, 0
    %p48 = por %p46, %p47
    %p49 = scmp.ne.s32.totalorder %s35, %s36
    %p50 = scmp.eq.s32.totalorder %s14, 7
    %p51 = por %p49, %p50
    %p53 = scmp.ne.s32.totalorder %s36, %s52
    %p54 = scmp.eq.s32.totalorder %s14, 0
    %p55 = por %p53, %p54
    %s56 = ssub.s32 %s15, %s27
    %p57 = scmp.eq.s32.totalorder %s56, 0
    %s59 = sadd.s32 %s58, 1
    %s60 = scalar_select %p57, %s58, %s59
    %p63 = pneg %p57
    %p64 = scmp.eq.s32.totalorder %s8, 7
    %p65 = por %p63, %p64
    %p66 = scmp.ne.s32.totalorder %s58, %s61
    %p67 = scmp.eq.s32.totalorder %s8, 0
    %p68 = por %p66, %p67
    %p69 = scmp.ne.s32.totalorder %s58, %s61
    %p70 = scmp.eq.s32.totalorder %s13, 7
    %p71 = por %p69, %p70
    %p72 = scmp.ne.s32.totalorder %s61, %s62
    %p73 = scmp.eq.s32.totalorder %s13, 0
    %p74 = por %p72, %p73
    %p75 = scmp.ne.s32.totalorder %s61, %s62
    %p76 = scmp.eq.s32.totalorder %s14, 7
    %p77 = por %p75, %p76
    %p79 = scmp.ne.s32.totalorder %s62, %s78
    %p80 = scmp.eq.s32.totalorder %s14, 0
    %p81 = por %p79, %p80
    %s82 = ssub.s32 %s16, %s23
    %s83 = ssub.s32 %s15, %s27
    %s84 = sor.u32 %s82, %s83
    %p85 = scmp.eq.s32.totalorder %s84, 0
    %s87 = sadd.s32 %s86, 1
    %s88 = scalar_select %p85, %s86, %s87
    %p91 = pneg %p85
    %p92 = scmp.eq.s32.totalorder %s8, 7
    %p93 = por %p91, %p92
    %p94 = scmp.ne.s32.totalorder %s86, %s89
    %p95 = scmp.eq.s32.totalorder %s8, 0
    %p96 = por %p94, %p95
    %p97 = scmp.ne.s32.totalorder %s86, %s89
    %p98 = scmp.eq.s32.totalorder %s13, 7
    %p99 = por %p97, %p98
    %p100 = scmp.ne.s32.totalorder %s89, %s90
    %p101 = scmp.eq.s32.totalorder %s13, 0
    %p102 = por %p100, %p101
    %p103 = scmp.ne.s32.totalorder %s89, %s90
    %p104 = scmp.eq.s32.totalorder %s14, 7
    %p105 = por %p103, %p104
    %p107 = scmp.ne.s32.totalorder %s90, %s106
    %p108 = scmp.eq.s32.totalorder %s14, 0
    %p109 = por %p107, %p108
    %p110 = scmp.le.s32.totalorder 1, %s8
    %p111 = scmp.lt.s32.totalorder %s8, 9
    %p112 = pnand %p110, %p111
    %p113 = pneg %p112
    // Predicated region
    $region9: #{rel_pos_embed.1} parent=5 // pred_check
      _
    $region10: #{rel_pos_embed.1} parent=5 // pred_check_branch
      %115 = sbr.rel (%p112) target = $region12
    $region11: #{rel_pos_embed.1} parent=5 // pred_region
      %s116 = ssub.s32 %s8, 1
    $region12: #{rel_pos_embed.1} parent=5 // pred_fallthru
      _
    %p117 = scmp.lt.s32.totalorder %s8, 8
    // Predicated region
    $region13: #{rel_pos_embed.1} parent=5 // pred_check
      %p118 = pneg %p117
    $region14: #{rel_pos_embed.1} parent=5 // pred_check_branch
      %120 = sbr.rel (%p118) target = $region16
    $region15: #{rel_pos_embed.1} parent=5 // pred_region
      // Predicated region
      $region17: #{rel_pos_embed.1} parent=15 // pred_check
        %p121 = pneg %p42
      $region18: #{rel_pos_embed.1} parent=15 // pred_check_branch
        %123 = sbr.rel (%p121) target = $region20
      $region19: #{rel_pos_embed.1} parent=15 // pred_region
        %p124 = scmp.lt.s32.totalorder %s16, 0
        %s125 = scalar_select %p124, %s16, 0
        %p126 = scmp.lt.s32.totalorder %s15, 7
        %s127 = scalar_select %p126, %s15, 7
        %s128 = smul.addr %s125, 8
        %s129 = sadd.s32 %s127, %s128
        %s130 = smul.addr %s129, 2
        %s131 = scalar_lea.vmem %s0, %s130
      $region20: #{rel_pos_embed.1} parent=15 // pred_fallthru
        _
      // Predicated region
      $region21: #{rel_pos_embed.1} parent=15 // pred_check
        %p132 = pneg %p68
      $region22: #{rel_pos_embed.1} parent=15 // pred_check_branch
        %134 = sbr.rel (%p132) target = $region24
      $region23: #{rel_pos_embed.1} parent=15 // pred_region
        %p135 = scmp.lt.s32.totalorder %s15, 7
        %s136 = scalar_select %p135, %s15, 7
        %s137 = scalar_lea.vmem %s1, %s136
      $region24: #{rel_pos_embed.1} parent=15 // pred_fallthru
        _
    $region16: #{rel_pos_embed.1} parent=5 // pred_fallthru
      _
    %p138 = scmp.le.s32.totalorder 1, %s8
    %p139 = scmp.lt.s32.totalorder %s8, 9
    %p140 = pnand %p138, %p139
    %p141 = pneg %p140
    // Predicated region
    $region25: #{rel_pos_embed.1} parent=5 // pred_check
      _
    $region26: #{rel_pos_embed.1} parent=5 // pred_check_branch
      %143 = sbr.rel (%p140) target = $region28
    $region27: #{rel_pos_embed.1} parent=5 // pred_region
      %s144 = ssub.s32 %s8, 1
      %p145 = scmp.lt.s32.totalorder %s18, 0
      %s146 = scalar_select %p145, %s18, 0
      %p147 = scmp.lt.s32.totalorder %s17, 7
      %s148 = scalar_select %p147, %s17, 7
      %s149 = smul.addr %s146, 8
      %s150 = sadd.s32 %s148, %s149
      %s151 = smul.addr %s150, 2
      %s152 = scalar_lea.vmem %s0, %s151
      %p153 = pneg %p48
      %p154 = pneg %p45
      %p155 = scmp.lt.s32.totalorder %s17, 7
      %s156 = scalar_select %p155, %s17, 7
      %s157 = scalar_lea.vmem %s1, %s156
      %p158 = pneg %p74
      %p159 = pneg %p71
      %p160 = pneg %p102
      %p161 = pneg %p99
      %p162 = scmp.lt.s32.totalorder %s18, 0
      %s163 = scalar_select %p162, %s18, 0
      %p164 = scmp.lt.s32.totalorder %s17, 7
      %s165 = scalar_select %p164, %s17, 7
      %s166 = smul.addr %s163, 8
      %s167 = sadd.s32 %s165, %s166
      %s168 = smul.addr %s167, 2
      %s169 = scalar_lea.vmem %s2, %s168
      %p170 = scmp.lt.s32.totalorder %s18, 0
      %s171 = scalar_select %p170, %s18, 0
      %p172 = scmp.lt.s32.totalorder %s17, 7
      %s173 = scalar_select %p172, %s17, 7
      %s174 = smul.addr %s171, 8
      %s175 = sadd.s32 %s173, %s174
      %s176 = smul.addr %s175, 2
      %s177 = scalar_lea.vmem %s0, %s176
      %p178 = scmp.lt.s32.totalorder %s17, 7
      %s179 = scalar_select %p178, %s17, 7
      %s180 = scalar_lea.vmem %s1, %s179
      %p181 = scmp.lt.s32.totalorder %s18, 0
      %s182 = scalar_select %p181, %s18, 0
      %p183 = scmp.lt.s32.totalorder %s17, 7
      %s184 = scalar_select %p183, %s17, 7
      %s185 = smul.addr %s182, 8
      %s186 = sadd.s32 %s184, %s185
      %s187 = smul.addr %s186, 2
      %s188 = scalar_lea.vmem %s2, %s187
      %v189 = vld [vmem:[%s177] sm:$0x3]
      %v190 = vld [vmem:[%s180] sm:$0x1]
      %v192 = vlaneseq
      %v193 = vshrl.u32 %v192, 7
      %v194 = vsub.s32 0, %v193
      %v195 = vrot.slane %v190, %v194
      %v197 = vadd.f32 %v189, %v195
      %198 = vst [vmem:[%s188] sm:$0x3] %v197
      %p199 = scmp.lt.s32.totalorder %s18, 0
      %s200 = scalar_select %p199, %s18, 0
      %p201 = scmp.lt.s32.totalorder %s17, 7
      %s202 = scalar_select %p201, %s17, 7
      %s203 = smul.addr %s200, 8
      %s204 = sadd.s32 %s202, %s203
      %s205 = smul.addr %s204, 2
      %s206 = scalar_lea.vmem %s2, %s205
      // Predicated region
      $region29: #{rel_pos_embed.1} parent=27 // pred_check
        %p207 = pneg %p99
      $region30: #{rel_pos_embed.1} parent=27 // pred_check_branch
        %209 = sbr.rel (%p207) target = $region32
      $region31: #{rel_pos_embed.1} parent=27 // pred_region
        _
      $region32: #{rel_pos_embed.1} parent=27 // pred_fallthru
        _
    $region28: #{rel_pos_embed.1} parent=5 // pred_fallthru
      _
    %p210 = scmp.le.s32.totalorder 2, %s8
    // Predicated region
    $region33: #{rel_pos_embed.1} parent=5 // pred_check
      %p211 = pneg %p210
    $region34: #{rel_pos_embed.1} parent=5 // pred_check_branch
      %213 = sbr.rel (%p211) target = $region36
    $region35: #{rel_pos_embed.1} parent=5 // pred_region
      %s214 = ssub.s32 %s8, 2
      // Predicated region
      $region37: #{rel_pos_embed.1} parent=35 // pred_check
        %p215 = pneg %p105
      $region38: #{rel_pos_embed.1} parent=35 // pred_check_branch
        %217 = sbr.rel (%p215) target = $region40
      $region39: #{rel_pos_embed.1} parent=35 // pred_region
        %p218 = scmp.lt.s32.totalorder %s20, 0
        %s219 = scalar_select %p218, %s20, 0
        %p220 = scmp.lt.s32.totalorder %s19, 7
        %s221 = scalar_select %p220, %s19, 7
        %s222 = smul.addr %s219, 8
        %s223 = sadd.s32 %s221, %s222
        %s224 = smul.addr %s223, 2
        %s225 = scalar_lea.vmem %s2, %s224
      $region40: #{rel_pos_embed.1} parent=35 // pred_fallthru
        _
    $region36: #{rel_pos_embed.1} parent=5 // pred_fallthru
      _
  $region6: #{rel_pos_embed.1} parent=0 // loop_footer
    %s12 = sadd.s32 1, %s8
  $region7: #{rel_pos_embed.1} parent=0 // loop_footer_branch
    %7 = sbr.rel target = $region3
  $region8: #{rel_pos_embed.1} parent=0 // loop_exit
    _

</llo_original>
